<compile_context>
chip_gen: v7x
topology: tpu7x:2x2x1
jax: 0.10.0
libtpu: 0.0.40
codegen_flags: <defaults>
</compile_context>

<pallas_src>
import functools

import jax
import jax.numpy as jnp
from jax.experimental import pallas as pl
from jax.experimental.pallas import tpu as pltpu

_LANES = 128
_SUBLANES = 8
_ALIGN = _LANES * _SUBLANES  # 1024 elements


def _hardswish_kernel(x_ref, o_ref):
    x = x_ref[...]
    # Hardsigmoid(x) = clamp(x/6 + 0.5, 0, 1); f32 math (no-op cast for f32 inputs).
    xf = x.astype(jnp.float32)
    gate = jnp.clip(xf * (1.0 / 6.0) + 0.5, 0.0, 1.0)
    o_ref[...] = (xf * gate).astype(o_ref.dtype)


def _hardswish_jnp(x):
    """Plain-jnp hardswish, used only for sub-128-element ragged tails."""
    xf = x.astype(jnp.float32)
    gate = jnp.clip(xf * (1.0 / 6.0) + 0.5, 0.0, 1.0)
    return (xf * gate).astype(x.dtype)


@functools.lru_cache(maxsize=1)
def _chip_params():
    """Best-effort (tensorcores_per_chip, target_block_bytes); safe defaults."""
    num_tc = 1
    block_bytes = 2 * 1024 * 1024  # safe on v5e's 16 MiB scoped-VMEM default
    try:
        kind = jax.devices()[0].device_kind.lower()
    except Exception:  # pragma: no cover - defensive
        kind = ""
    if "v7" in kind:
        num_tc = 2                       # two TensorCores per chip
        block_bytes = 4 * 1024 * 1024    # 16 MiB total < 32 MiB scoped default
    elif "v6" in kind:
        block_bytes = 4 * 1024 * 1024    # 16 MiB total < 32 MiB scoped default
    return num_tc, block_bytes


def _run_slab(x_flat, *, target_block_bytes, num_cores):
    """Run the elementwise kernel on a lane-dense (rows, 128) slab."""
    rows_total, lanes = x_flat.shape
    itemsize = jnp.dtype(x_flat.dtype).itemsize

    if rows_total <= _SUBLANES:
        # Single block equal to the full array dims (allowed by the (8,128)
        # rule: block dim == full array dim).
        tile_rows = rows_total
        num_blocks = 1
    else:
        # Big blocks amortize the ~0.35 us per-grid-step overhead while keeping
        # in+out double buffering well under every generation's scoped-VMEM
        # default (2 MiB -> 8 MiB on v5e, 4 MiB -> 16 MiB on v6e/v7x).
        tile_rows = max(_SUBLANES, target_block_bytes // (lanes * itemsize))
        tile_rows = (tile_rows // _SUBLANES) * _SUBLANES
        # Keep tile_rows a multiple of 8.  Only clamp to rows_total when that
        # is itself a multiple of 8; otherwise clamp to the largest multiple of
        # 8 below it and let Pallas mask the ragged last block.
        if rows_total % _SUBLANES == 0:
            tile_rows = min(tile_rows, rows_total)
        else:
            tile_rows = min(tile_rows, (rows_total // _SUBLANES) * _SUBLANES)
        num_blocks = pl.cdiv(rows_total, tile_rows)

        # Multi-TensorCore chips (v7x): balance small grids across the cores so
        # neither TC idles.  Skipped on single-TC chips (v5e/v6e) where it only
        # adds a grid step.
        if num_cores > 1 and num_blocks < 8 and rows_total >= 2 * _SUBLANES:
            want = num_blocks + (num_blocks % num_cores)
            want = max(want, num_cores)
            tile_rows = pl.cdiv(pl.cdiv(rows_total, want), _SUBLANES) * _SUBLANES
            tile_rows = max(tile_rows, _SUBLANES)
            num_blocks = pl.cdiv(rows_total, tile_rows)

    n_elems = rows_total * lanes
    cost = pl.CostEstimate(
        flops=5 * n_elems,
        transcendentals=0,
        bytes_accessed=2 * n_elems * itemsize,
    )

    return pl.pallas_call(
        _hardswish_kernel,
        out_shape=jax.ShapeDtypeStruct((rows_total, lanes), x_flat.dtype),
        grid_spec=pltpu.PrefetchScalarGridSpec(
            num_scalar_prefetch=0,
            grid=(num_blocks,),
            in_specs=[pl.BlockSpec((tile_rows, lanes), lambda i: (i, 0))],
            out_specs=pl.BlockSpec((tile_rows, lanes), lambda i: (i, 0)),
        ),
        compiler_params=pltpu.CompilerParams(
            dimension_semantics=("parallel",)),
        cost_estimate=cost,
    )(x_flat)


def hardswish_replace(x, *, target_block_bytes=None):
    """x * hardsigmoid(x) (PyTorch HardswishReplace), any shape / float dtype."""
    orig_shape = x.shape
    n = x.size
    num_cores, default_block_bytes = _chip_params()
    if target_block_bytes is None:
        target_block_bytes = default_block_bytes

    if n % _LANES == 0:
        # Fast path: free reshape into a lane-dense (rows, 128) slab.  A row
        # count that is not a multiple of 8 is handled by masked stores on the
        # ragged last block (or a single full-dim block if rows <= 8).
        x_flat = x.reshape(-1, _LANES)
        out = _run_slab(x_flat, target_block_bytes=target_block_bytes,
                        num_cores=num_cores)
        return out.reshape(orig_shape)

    if n < _LANES:
        # Tiny input: pad to one (8, 128) block, run a single-block kernel and
        # slice back.  hardswish(0) == 0 so the padding never leaks; traffic is
        # negligible at this size.
        pad = _ALIGN - n
        xp = jnp.pad(x.reshape(-1), (0, pad)).reshape(_SUBLANES, _LANES)
        out = _run_slab(xp, target_block_bytes=target_block_bytes,
                        num_cores=num_cores)
        return out.reshape(-1)[:n].reshape(orig_shape)

    # Mixed path (n >= 128, not a multiple of 128): run the kernel on the
    # 128-aligned prefix and compute the <128-element tail with plain jnp,
    # then stitch.  No full-array pad and no full padded-array slice.
    n_aligned = (n // _LANES) * _LANES
    x_lin = x.reshape(-1)
    head = x_lin[:n_aligned].reshape(-1, _LANES)
    head_out = _run_slab(head, target_block_bytes=target_block_bytes,
                         num_cores=num_cores).reshape(-1)
    tail_out = _hardswish_jnp(x_lin[n_aligned:])
    return jnp.concatenate([head_out, tail_out]).reshape(orig_shape)


def _hardswish_ref(x):
    xf = x.astype(jnp.float32)
    gate = jnp.clip(xf / 6.0 + 0.5, 0.0, 1.0)
    return (xf * gate).astype(x.dtype)


if __name__ == "__main__":
    # Primary case: NCHW input matching the PyTorch module
    # (batch=2, channels=4, 16x16 spatial) -> 2048 elems, aligned fast path.
    x = jax.random.normal(jax.random.PRNGKey(0), (2, 4, 16, 16),
                          dtype=jnp.float32) * 4.0
    out = jax.block_until_ready(hardswish_replace(x))
    ref = _hardswish_ref(x)
    assert out.shape == x.shape and out.dtype == x.dtype
    assert jnp.allclose(out, ref, atol=1e-6, rtol=1e-6)

    # n % 128 == 0 but rows not a multiple of 8 (full-dim / ragged-row block).
    x2 = jax.random.normal(jax.random.PRNGKey(1), (5, 128),
                           dtype=jnp.float32) * 4.0
    out2 = jax.block_until_ready(hardswish_replace(x2))
    assert out2.shape == x2.shape and out2.dtype == x2.dtype
    assert jnp.allclose(out2, _hardswish_ref(x2), atol=1e-6, rtol=1e-6)

    # n % 128 != 0, n >= 128: kernel on aligned prefix + jnp tail + stitch.
    x3 = jax.random.normal(jax.random.PRNGKey(2), (3, 300),
                           dtype=jnp.float32) * 4.0
    out3 = jax.block_until_ready(hardswish_replace(x3))
    assert out3.shape == x3.shape and out3.dtype == x3.dtype
    assert jnp.allclose(out3, _hardswish_ref(x3), atol=1e-6, rtol=1e-6)

    # n < 128: tiny padded single-block kernel path.
    x4 = jax.random.normal(jax.random.PRNGKey(3), (3, 5, 7),
                           dtype=jnp.float32) * 4.0
    out4 = jax.block_until_ready(hardswish_replace(x4))
    assert out4.shape == x4.shape and out4.dtype == x4.dtype
    assert jnp.allclose(out4, _hardswish_ref(x4), atol=1e-6, rtol=1e-6)

    print("KERNEL_OK")
</pallas_src>

<mosaic_0001>
module attributes {stable_mosaic.version = 11 : i64} {
  func.func @_hardswish_kernel(%arg0: i32, %arg1: memref<16x128xf32, #tpu.memory_space<vmem>>, %arg2: memref<16x128xf32, #tpu.memory_space<vmem>>) attributes {dimension_semantics = [#tpu.dimension_semantics<parallel>], iteration_bounds = array<i64: 1>, scalar_prefetch = 0 : i64, scratch_operands = 0 : i64, tpu.core_type = #tpu.core_type<tc>, window_params = [{transform_indices = @transform_0, window_bounds = array<i64: 16, 128>}, {transform_indices = @transform_1, window_bounds = array<i64: 16, 128>}]} {
    %c0 = arith.constant 0 : index
    %c0_0 = arith.constant 0 : index
    %0 = vector.load %arg1[%c0, %c0_0] : memref<16x128xf32, #tpu.memory_space<vmem>>, vector<16x128xf32>
    %cst = arith.constant 0.166666672 : f32
    %1 = vector.broadcast %cst : f32 to vector<16x128xf32>
    %2 = arith.mulf %0, %1 : vector<16x128xf32>
    %cst_1 = arith.constant 5.000000e-01 : f32
    %3 = vector.broadcast %cst_1 : f32 to vector<16x128xf32>
    %4 = arith.addf %2, %3 : vector<16x128xf32>
    %cst_2 = arith.constant 0.000000e+00 : f32
    %cst_3 = arith.constant 1.000000e+00 : f32
    %5 = vector.broadcast %cst_2 : f32 to vector<16x128xf32>
    %6 = arith.maximumf %5, %4 : vector<16x128xf32>
    %7 = vector.broadcast %cst_3 : f32 to vector<16x128xf32>
    %8 = arith.minimumf %7, %6 : vector<16x128xf32>
    %9 = arith.mulf %0, %8 : vector<16x128xf32>
    %c0_4 = arith.constant 0 : index
    %c0_5 = arith.constant 0 : index
    %10 = vector.load %arg2[%c0_4, %c0_5] : memref<16x128xf32, #tpu.memory_space<vmem>>, vector<16x128xf32>
    tpu.vector_store %arg2[%c0_4, %c0_5], %9 {strides = array<i32>} : memref<16x128xf32, #tpu.memory_space<vmem>>, vector<16x128xf32>,
    return
  }
  func.func @transform_0(%arg0: i32) -> (i32, i32) {
    %c0_i32 = arith.constant 0 : i32
    %c0_i32_0 = arith.constant 0 : i32
    return %arg0, %c0_i32 : i32, i32
  }
  func.func @transform_1(%arg0: i32) -> (i32, i32) {
    %c0_i32 = arith.constant 0 : i32
    %c0_i32_0 = arith.constant 0 : i32
    return %arg0, %c0_i32 : i32, i32
  }
}

</mosaic_0001>

<llo_original>
// kernel: tpu_custom_call.1
$region0: #{tpu_custom_call.1}
  #allocation0 [shape = 'u32[]', space=smem, size = 0x4, offset = 0x4, fixed_abs, tag = 'smem constant byte address 0x4 - core index']
  #allocation1 [shape = 'u32[144,128]{1,0:T(1,128)}', space=vmem, size = 0x12000, scoped, tag = 'internal scratch']
  %s0 = inlined_call_operand.hbm [shape: f32[16,128], index: 0, kind: input, shape index: {}]
  %s1 = inlined_call_operand.hbm [shape: f32[16,128], index: 1, kind: output, shape index: {}]
  %s2 = sld [smem:[#allocation0]]
  $region18: #{tpu_custom_call.1} parent=0
    _
  %s4 = ssub.s32 1, %s2
  %s5 = scalar_select 0, %s4, %s2
  $region1: #{tpu_custom_call.1} parent=0
    #allocation2 [shape = 'u8[8192]{0}', space=vmem, size = 0x2000, scoped, tag = 'input window, operand 0, single buffered']
    #allocation3 [shape = 's32[1]{0}', space=sflag, size = 0x4, scoped, tag = 'scoped memory for tpu_custom_call.1']
    #allocation4 [shape = 's32[1]{0}', space=sflag, size = 0x4, scoped, tag = 'scoped memory for tpu_custom_call.1']
    #allocation5 [shape = 'u8[8192]{0}', space=vmem, size = 0x2000, scoped, tag = 'output window, operand 0, single buffered']
    %6 = vsyncpa [#allocation3], 0
    %7 = vsyncpa [#allocation4], 0
    // Predicated region
    $region2: #{tpu_custom_call.1} parent=1 // pred_check
      _
    $region3: #{tpu_custom_call.1} parent=1 // pred_check_branch
      %9 = sbr.rel (0) target = $region5
    $region4: #{tpu_custom_call.1} parent=1 // pred_region
      %s11 = ssub.s32 256, 256
      %12 = vsyncadd [#allocation3], %s11
      %s13 = sshll.u32 [#allocation2], 4
      %s14 = int_to_ptr.vmem [resolvable:$true] %s13
      %19 = dma.hbm_to_vmem [thread:$0]  %s0, 256, %s14, [#allocation3], 128, 128, 8
    $region5: #{tpu_custom_call.1} parent=1 // pred_fallthru
      _
    // Predicated region
    $region6: #{tpu_custom_call.1} parent=1 // pred_check
      _
    $region7: #{tpu_custom_call.1} parent=1 // pred_check_branch
      %21 = sbr.rel (0) target = $region9
    $region8: #{tpu_custom_call.1} parent=1 // pred_region
      %22 = dma.done [#allocation3], 256
    $region9: #{tpu_custom_call.1} parent=1 // pred_fallthru
      _
    %v23 = vld [vmem:[#allocation2] sm:$0xff]
    %v24 = vld [vmem:[#allocation2 + $0x8] sm:$0xff]
    %v25 = vmul.f32 %v23, 0.16666667
    %v26 = vmul.f32 %v24, 0.16666667
    %v27 = vadd.f32 %v25, 0.5
    %v28 = vadd.f32 %v26, 0.5
    %v29 = vmax.f32 %v27, 0.0
    %v30 = vmax.f32 %v28, 0.0
    %v31 = vmin.f32 %v29, 1.0
    %v32 = vmin.f32 %v30, 1.0
    %v33 = vmul.f32 %v23, %v31
    %v34 = vmul.f32 %v24, %v32
    %35 = vst [vmem:[#allocation5] sm:$0xff] %v33
    %36 = vst [vmem:[#allocation5 + $0x8] sm:$0xff] %v34
    // Predicated region
    $region10: #{tpu_custom_call.1} parent=1 // pred_check
      _
    $region11: #{tpu_custom_call.1} parent=1 // pred_check_branch
      %38 = sbr.rel (0) target = $region13
    $region12: #{tpu_custom_call.1} parent=1 // pred_region
      %s40 = ssub.s32 256, 256
      %41 = vsyncadd [#allocation4], %s40
      %s42 = sshll.u32 [#allocation5], 4
      %s43 = int_to_ptr.vmem [resolvable:$true] %s42
      %48 = dma.vmem_to_hbm [thread:$0]  %s43, 256, %s1, [#allocation4], 128, 128, 8
    $region13: #{tpu_custom_call.1} parent=1 // pred_fallthru
      _
    // Predicated region
    $region14: #{tpu_custom_call.1} parent=1 // pred_check
      _
    $region15: #{tpu_custom_call.1} parent=1 // pred_check_branch
      %50 = sbr.rel (0) target = $region17
    $region16: #{tpu_custom_call.1} parent=1 // pred_region
      %51 = dma.done [#allocation4], 256
    $region17: #{tpu_custom_call.1} parent=1 // pred_fallthru
      _
    %52 = vsyncpa [#allocation3], 1
    %53 = vsyncpa [#allocation4], 1

</llo_original>
